<compile_context>
chip_gen: v6e
topology: v6e:2x2x1
jax: 0.10.0
libtpu: 0.0.40
codegen_flags: <defaults>
</compile_context>

<pallas_src>
import jax
import jax.numpy as jnp
from jax.experimental import pallas as pl
from jax.experimental.pallas import tpu as pltpu

_LANE = 128


def _round_up(n, m):
    return ((n + m - 1) // m) * m


def _cdiv(a, b):
    return -(-a // b)


def mlp_kernel(x_ref, w1_ref, b1_ref, w2_ref, b2_ref, w3_ref, b3_ref, o_ref):
    # x_T tile: [4, TB]  (batch on lanes)
    xt = x_ref[...]

    # Layer 1: [20, 4] @ [4, TB] + [20, 1] -> ReLU
    h1 = jnp.dot(w1_ref[...], xt, preferred_element_type=jnp.float32) + b1_ref[...]
    h1 = jnp.maximum(h1, 0.0)

    # Layer 2: [20, 20] @ [20, TB] + [20, 1] -> ReLU
    h2 = jnp.dot(w2_ref[...], h1, preferred_element_type=jnp.float32) + b2_ref[...]
    h2 = jnp.maximum(h2, 0.0)

    # Layer 3: [1, 20] @ [20, TB] + [1, 1] -> lane-dense [1, TB] output
    out = jnp.dot(w3_ref[...], h2, preferred_element_type=jnp.float32) + b3_ref[...]

    o_ref[...] = out.astype(o_ref.dtype)


def _pick_tiling(batch, tb_req):
    """Choose (tile, n_tiles, padded_batch).

    - tile is a multiple of 128 lanes and <= lane-padded batch.
    - >=2 tiles whenever the batch spans >=2 lane groups (v7x dual-TC).
    - tiles are rebalanced so the last tile is not mostly padding.
    """
    tb = max(_LANE, _round_up(int(tb_req), _LANE))
    bp128 = _round_up(max(int(batch), 1), _LANE)
    tb = min(tb, bp128)
    g = _cdiv(bp128, tb)
    if bp128 >= 2 * _LANE:
        g = max(g, 2)                       # shard across both v7x TensorCores
    tb = _round_up(_cdiv(bp128, g), _LANE)  # rebalance tile size across g steps
    bp = g * tb
    return tb, g, bp


def _vmem_limit_bytes(tile):
    """Per-review VMEM re-budget: recompute the scoped limit from the tile.

    x block pads 4->8 sublanes, out pads 1->8 (both double buffered);
    h1/h2 pad 20->24 sublanes; allow one extra transient of the same size
    plus ~1 MiB for weight/bias tiles and compiler scratch, then 1.5x margin.
    """
    x_bytes = 8 * tile * 4 * 2
    o_bytes = 8 * tile * 4 * 2
    inter_bytes = 3 * (24 * tile * 4)
    est = (x_bytes + o_bytes + inter_bytes) * 3 // 2 + (1 << 20)
    return int(min(96 * 1024 * 1024, max(32 * 1024 * 1024, est)))


def mlp_forward_feature_major(xt, w1, b1, w2, b2, w3, b3, *, tb=32768):
    """xt: [4, B] float32 (feature-major) -> [1, B] float32.

    Preferred entry point: the producer hands over feature-major activations,
    so no HBM->HBM transpose of the dominant operand is needed."""
    feat, batch = xt.shape
    tile, grid, bp = _pick_tiling(batch, tb)

    if bp != batch:
        xt = jnp.pad(xt, ((0, 0), (0, bp - batch)))

    def const_spec(shape):
        # Whole-array block, constant index_map -> VMEM-resident across steps.
        return pl.BlockSpec(shape, lambda i: tuple(0 for _ in shape))

    out_t = pl.pallas_call(
        mlp_kernel,
        out_shape=jax.ShapeDtypeStruct((1, bp), jnp.float32),
        grid=(grid,),
        in_specs=[
            pl.BlockSpec((feat, tile), lambda i: (0, i)),  # x_T, tiled over batch
            const_spec(w1.shape),
            const_spec(b1.shape),
            const_spec(w2.shape),
            const_spec(b2.shape),
            const_spec(w3.shape),
            const_spec(b3.shape),
        ],
        out_specs=pl.BlockSpec((1, tile), lambda i: (0, i)),
        compiler_params=pltpu.CompilerParams(
            dimension_semantics=("parallel",),          # batch tiles across TCs
            vmem_limit_bytes=_vmem_limit_bytes(tile),   # recomputed per tile size
        ),
    )(xt, w1, b1, w2, b2, w3, b3)

    return out_t[:, :batch]


def mlp_forward(x, w1, b1, w2, b2, w3, b3, *, tb=32768):
    """x: [B, 4] float32 -> [B, 1] float32 (PyTorch nn.Linear semantics).

    Thin boundary wrapper: transposes once to feature-major and calls the
    no-transpose kernel path.  For large B, prefer producing [4, B] upstream
    and calling mlp_forward_feature_major directly to avoid this copy."""
    batch = x.shape[0]
    out_t = mlp_forward_feature_major(x.T, w1, b1, w2, b2, w3, b3, tb=tb)
    return out_t.T.reshape(batch, 1)


def init_params(key):
    """Deterministic init mimicking PyTorch nn.Linear default (uniform +-1/sqrt(fan_in)).

    Weights stored PyTorch-native: w[out_features, in_features]; b[out_features, 1]."""
    k1, k2, k3, k4, k5, k6 = jax.random.split(key, 6)

    def uni(k, shape, fan_in):
        bound = 1.0 / jnp.sqrt(jnp.float32(fan_in))
        return jax.random.uniform(k, shape, jnp.float32, -bound, bound)

    w1 = uni(k1, (20, 4), 4)
    b1 = uni(k2, (20, 1), 4)
    w2 = uni(k3, (20, 20), 20)
    b2 = uni(k4, (20, 1), 20)
    w3 = uni(k5, (1, 20), 20)
    b3 = uni(k6, (1, 1), 20)
    return w1, b1, w2, b2, w3, b3


def reference_forward(x, w1, b1, w2, b2, w3, b3):
    h1 = jnp.maximum(x @ w1.T + b1.T, 0.0)
    h2 = jnp.maximum(h1 @ w2.T + b2.T, 0.0)
    return h2 @ w3.T + b3.T


if __name__ == "__main__":
    key = jax.random.PRNGKey(0)
    pkey, xkey1, xkey2, xkey3 = jax.random.split(key, 4)

    params = init_params(pkey)

    # 1) Small batch, standard [B, 4] interface (matches nn.Linear(4, 20)).
    batch = 8
    x = jax.random.normal(xkey1, (batch, 4), jnp.float32)
    out = jax.block_until_ready(mlp_forward(x, *params))
    ref = reference_forward(x, *params)
    assert out.shape == (batch, 1)
    assert jnp.allclose(out, ref, atol=1e-5, rtol=1e-5), "mismatch vs reference (B=8)"

    # 2) Batch padding + multi-step grid (explicit small tile tb=128).
    batch2 = 300
    x2 = jax.random.normal(xkey2, (batch2, 4), jnp.float32)
    out2 = jax.block_until_ready(mlp_forward(x2, *params, tb=128))
    ref2 = reference_forward(x2, *params)
    assert out2.shape == (batch2, 1)
    assert jnp.allclose(out2, ref2, atol=1e-5, rtol=1e-5), "mismatch vs reference (B=300)"

    # 3) Feature-major fast path (no wrapper transpose) with the default large
    #    tile and the >=2-grid-step rebalancing.
    batch3 = 4096
    x3t = jax.random.normal(xkey3, (4, batch3), jnp.float32)   # produced feature-major
    out3 = jax.block_until_ready(mlp_forward_feature_major(x3t, *params))
    ref3 = reference_forward(x3t.T, *params)
    assert out3.shape == (1, batch3)
    assert jnp.allclose(out3.T, ref3, atol=1e-5, rtol=1e-5), "mismatch vs reference (B=4096, feature-major)"

    print("KERNEL_OK")
</pallas_src>

<mosaic_0001>
module attributes {stable_mosaic.version = 11 : i64} {
  func.func @mlp_kernel(%arg0: i32, %arg1: memref<4x128xf32, #tpu.memory_space<vmem>>, %arg2: memref<20x4xf32, #tpu.memory_space<vmem>>, %arg3: memref<20x1xf32, #tpu.memory_space<vmem>>, %arg4: memref<20x20xf32, #tpu.memory_space<vmem>>, %arg5: memref<20x1xf32, #tpu.memory_space<vmem>>, %arg6: memref<1x20xf32, #tpu.memory_space<vmem>>, %arg7: memref<1x1xf32, #tpu.memory_space<vmem>>, %arg8: memref<1x128xf32, #tpu.memory_space<vmem>>) attributes {dimension_semantics = [#tpu.dimension_semantics<parallel>], iteration_bounds = array<i64: 1>, scalar_prefetch = 0 : i64, scratch_operands = 0 : i64, tpu.core_type = #tpu.core_type<tc>, window_params = [{transform_indices = @transform_0, window_bounds = array<i64: 4, 128>}, {pipeline_mode = #tpu.pipeline_mode<synchronous>, transform_indices = @transform_1, window_bounds = array<i64: 20, 4>}, {pipeline_mode = #tpu.pipeline_mode<synchronous>, transform_indices = @transform_2, window_bounds = array<i64: 20, 1>}, {pipeline_mode = #tpu.pipeline_mode<synchronous>, transform_indices = @transform_3, window_bounds = array<i64: 20, 20>}, {pipeline_mode = #tpu.pipeline_mode<synchronous>, transform_indices = @transform_4, window_bounds = array<i64: 20, 1>}, {pipeline_mode = #tpu.pipeline_mode<synchronous>, transform_indices = @transform_5, window_bounds = array<i64: 1, 20>}, {pipeline_mode = #tpu.pipeline_mode<synchronous>, transform_indices = @transform_6, window_bounds = array<i64: 1, 1>}, {transform_indices = @transform_7, window_bounds = array<i64: 1, 128>}]} {
    %c0 = arith.constant 0 : index
    %c0_0 = arith.constant 0 : index
    %0 = vector.load %arg1[%c0, %c0_0] : memref<4x128xf32, #tpu.memory_space<vmem>>, vector<4x128xf32>
    %c0_1 = arith.constant 0 : index
    %c0_2 = arith.constant 0 : index
    %1 = vector.load %arg2[%c0_1, %c0_2] : memref<20x4xf32, #tpu.memory_space<vmem>>, vector<20x4xf32>
    %cst = arith.constant dense<0.000000e+00> : vector<20x128xf32>
    %2 = tpu.matmul %1, %0, %cst {dimension_numbers = #tpu.dot_dimension_numbers<[1], [0], [0], [1], [0, 0, 1, 1], [], []>} : vector<20x4xf32>, vector<4x128xf32>, vector<20x128xf32> -> vector<20x128xf32>
    %c0_3 = arith.constant 0 : index
    %c0_4 = arith.constant 0 : index
    %3 = vector.load %arg3[%c0_3, %c0_4] : memref<20x1xf32, #tpu.memory_space<vmem>>, vector<20x1xf32>
    %4 = vector.broadcast %3 : vector<20x1xf32> to vector<20x128xf32>
    %5 = arith.addf %2, %4 : vector<20x128xf32>
    %cst_5 = arith.constant 0.000000e+00 : f32
    %6 = vector.broadcast %cst_5 : f32 to vector<20x128xf32>
    %7 = arith.maximumf %5, %6 : vector<20x128xf32>
    %c0_6 = arith.constant 0 : index
    %c0_7 = arith.constant 0 : index
    %8 = vector.load %arg4[%c0_6, %c0_7] : memref<20x20xf32, #tpu.memory_space<vmem>>, vector<20x20xf32>
    %cst_8 = arith.constant dense<0.000000e+00> : vector<20x128xf32>
    %9 = tpu.matmul %8, %7, %cst_8 {dimension_numbers = #tpu.dot_dimension_numbers<[1], [0], [0], [1], [0, 0, 1, 1], [], []>} : vector<20x20xf32>, vector<20x128xf32>, vector<20x128xf32> -> vector<20x128xf32>
    %c0_9 = arith.constant 0 : index
    %c0_10 = arith.constant 0 : index
    %10 = vector.load %arg5[%c0_9, %c0_10] : memref<20x1xf32, #tpu.memory_space<vmem>>, vector<20x1xf32>
    %11 = vector.broadcast %10 : vector<20x1xf32> to vector<20x128xf32>
    %12 = arith.addf %9, %11 : vector<20x128xf32>
    %cst_11 = arith.constant 0.000000e+00 : f32
    %13 = vector.broadcast %cst_11 : f32 to vector<20x128xf32>
    %14 = arith.maximumf %12, %13 : vector<20x128xf32>
    %c0_12 = arith.constant 0 : index
    %c0_13 = arith.constant 0 : index
    %15 = vector.load %arg6[%c0_12, %c0_13] : memref<1x20xf32, #tpu.memory_space<vmem>>, vector<1x20xf32>
    %cst_14 = arith.constant dense<0.000000e+00> : vector<1x128xf32>
    %16 = tpu.matmul %15, %14, %cst_14 {dimension_numbers = #tpu.dot_dimension_numbers<[1], [0], [0], [1], [0, 0, 1, 1], [], []>} : vector<1x20xf32>, vector<20x128xf32>, vector<1x128xf32> -> vector<1x128xf32>
    %c0_15 = arith.constant 0 : index
    %c0_16 = arith.constant 0 : index
    %17 = vector.load %arg7[%c0_15, %c0_16] : memref<1x1xf32, #tpu.memory_space<vmem>>, vector<1x1xf32>
    %18 = vector.broadcast %17 : vector<1x1xf32> to vector<1x128xf32>
    %19 = arith.addf %16, %18 : vector<1x128xf32>
    %c0_17 = arith.constant 0 : index
    %c0_18 = arith.constant 0 : index
    %20 = vector.load %arg8[%c0_17, %c0_18] : memref<1x128xf32, #tpu.memory_space<vmem>>, vector<1x128xf32>
    tpu.vector_store %arg8[%c0_17, %c0_18], %19 {strides = array<i32>} : memref<1x128xf32, #tpu.memory_space<vmem>>, vector<1x128xf32>,
    return
  }
  func.func @transform_0(%arg0: i32) -> (i32, i32) {
    %c0_i32 = arith.constant 0 : i32
    %c0_i32_0 = arith.constant 0 : i32
    return %c0_i32, %arg0 : i32, i32
  }
  func.func @transform_1(%arg0: i32) -> (i32, i32) {
    %c0_i32 = arith.constant 0 : i32
    %c0_i32_0 = arith.constant 0 : i32
    %c0_i32_1 = arith.constant 0 : i32
    return %c0_i32, %c0_i32_0 : i32, i32
  }
  func.func @transform_2(%arg0: i32) -> (i32, i32) {
    %c0_i32 = arith.constant 0 : i32
    %c0_i32_0 = arith.constant 0 : i32
    %c0_i32_1 = arith.constant 0 : i32
    return %c0_i32, %c0_i32_0 : i32, i32
  }
  func.func @transform_3(%arg0: i32) -> (i32, i32) {
    %c0_i32 = arith.constant 0 : i32
    %c0_i32_0 = arith.constant 0 : i32
    %c0_i32_1 = arith.constant 0 : i32
    return %c0_i32, %c0_i32_0 : i32, i32
  }
  func.func @transform_4(%arg0: i32) -> (i32, i32) {
    %c0_i32 = arith.constant 0 : i32
    %c0_i32_0 = arith.constant 0 : i32
    %c0_i32_1 = arith.constant 0 : i32
    return %c0_i32, %c0_i32_0 : i32, i32
  }
  func.func @transform_5(%arg0: i32) -> (i32, i32) {
    %c0_i32 = arith.constant 0 : i32
    %c0_i32_0 = arith.constant 0 : i32
    %c0_i32_1 = arith.constant 0 : i32
    return %c0_i32, %c0_i32_0 : i32, i32
  }
  func.func @transform_6(%arg0: i32) -> (i32, i32) {
    %c0_i32 = arith.constant 0 : i32
    %c0_i32_0 = arith.constant 0 : i32
    %c0_i32_1 = arith.constant 0 : i32
    return %c0_i32, %c0_i32_0 : i32, i32
  }
  func.func @transform_7(%arg0: i32) -> (i32, i32) {
    %c0_i32 = arith.constant 0 : i32
    %c0_i32_0 = arith.constant 0 : i32
    return %c0_i32, %arg0 : i32, i32
  }
}

</mosaic_0001>

<llo_original>
// kernel: tpu_custom_call.1
$region0: #{tpu_custom_call.1}
  #allocation0 [shape = 'u32[]', space=smem, size = 0x4, offset = 0x4, fixed_abs, tag = 'smem constant byte address 0x4 - core index']
  #allocation1 [shape = 'u32[144,128]{1,0:T(1,128)}', space=vmem, size = 0x12000, scoped, tag = 'internal scratch']
  #allocation2 [shape = 'f32[1,1]{1,0:T(1,128)S(1)}', space=vmem, size = 0x200, scoped, tag = 'scoped memory for tpu_custom_call.1']
  %s0 = inlined_call_operand.vmem [shape: f32[4,128], index: 0, kind: input, shape index: {}]
  %s1 = inlined_call_operand.vmem [shape: f32[20,4], index: 1, kind: input, shape index: {}]
  %s2 = inlined_call_operand.vmem [shape: f32[20,1], index: 2, kind: input, shape index: {}]
  %s3 = inlined_call_operand.vmem [shape: f32[20,20], index: 3, kind: input, shape index: {}]
  %s4 = inlined_call_operand.vmem [shape: f32[20,1], index: 4, kind: input, shape index: {}]
  %s5 = inlined_call_operand.vmem [shape: f32[1,20], index: 5, kind: input, shape index: {}]
  %s6 = inlined_call_operand.<no memory space> [shape: f32[1,1], index: 6, kind: input, shape index: {}]
  %s7 = inlined_call_operand.hbm [shape: f32[1,128], index: 7, kind: output, shape index: {}]
  %s8 = sld [smem:[#allocation0]]
  $region38: #{tpu_custom_call.1} parent=0
    _
  %s10 = ssub.s32 1, %s8
  %s11 = scalar_select 0, %s10, %s8
  %v12 = vstv %s6
  %13 = vst [vmem:[#allocation2] sm:$0x1] %v12
  $region1: #{tpu_custom_call.1} parent=0
    #allocation3 [shape = 'u8[512]{0}', space=vmem, size = 0x400, scoped, tag = 'output window, operand 0, single buffered']
    #allocation4 [shape = 's32[1]{0}', space=sflag, size = 0x4, scoped, tag = 'scoped memory for tpu_custom_call.1']
    %14 = vsyncpa [#allocation4], 0
    // Predicated region
    $region2: #{tpu_custom_call.1} parent=1 // pred_check
      _
    $region3: #{tpu_custom_call.1} parent=1 // pred_check_branch
      %16 = sbr.rel (0) target = $region5
    $region4: #{tpu_custom_call.1} parent=1 // pred_region
      _
    $region5: #{tpu_custom_call.1} parent=1 // pred_fallthru
      _
    // Predicated region
    $region6: #{tpu_custom_call.1} parent=1 // pred_check
      _
    $region7: #{tpu_custom_call.1} parent=1 // pred_check_branch
      %18 = sbr.rel (0) target = $region9
    $region8: #{tpu_custom_call.1} parent=1 // pred_region
      _
    $region9: #{tpu_custom_call.1} parent=1 // pred_fallthru
      _
    // Predicated region
    $region10: #{tpu_custom_call.1} parent=1 // pred_check
      _
    $region11: #{tpu_custom_call.1} parent=1 // pred_check_branch
      %20 = sbr.rel (0) target = $region13
    $region12: #{tpu_custom_call.1} parent=1 // pred_region
      _
    $region13: #{tpu_custom_call.1} parent=1 // pred_fallthru
      _
    // Predicated region
    $region14: #{tpu_custom_call.1} parent=1 // pred_check
      _
    $region15: #{tpu_custom_call.1} parent=1 // pred_check_branch
      %22 = sbr.rel (0) target = $region17
    $region16: #{tpu_custom_call.1} parent=1 // pred_region
      _
    $region17: #{tpu_custom_call.1} parent=1 // pred_fallthru
      _
    // Predicated region
    $region18: #{tpu_custom_call.1} parent=1 // pred_check
      _
    $region19: #{tpu_custom_call.1} parent=1 // pred_check_branch
      %24 = sbr.rel (0) target = $region21
    $region20: #{tpu_custom_call.1} parent=1 // pred_region
      _
    $region21: #{tpu_custom_call.1} parent=1 // pred_fallthru
      _
    // Predicated region
    $region22: #{tpu_custom_call.1} parent=1 // pred_check
      _
    $region23: #{tpu_custom_call.1} parent=1 // pred_check_branch
      %26 = sbr.rel (0) target = $region25
    $region24: #{tpu_custom_call.1} parent=1 // pred_region
      _
    $region25: #{tpu_custom_call.1} parent=1 // pred_fallthru
      _
    // Predicated region
    $region26: #{tpu_custom_call.1} parent=1 // pred_check
      _
    $region27: #{tpu_custom_call.1} parent=1 // pred_check_branch
      %28 = sbr.rel (0) target = $region29
    $region28: #{tpu_custom_call.1} parent=1 // pred_region
      _
    $region29: #{tpu_custom_call.1} parent=1 // pred_fallthru
      _
    %v29 = vld [vmem:[%s0] sm:$0xf]
    %v30 = vld [vmem:[%s1] sm:$0xff]
    %v31 = vld [vmem:[%s1 + $0x8] sm:$0xff]
    %v32 = vld [vmem:[%s1 + $0x10] sm:$0xf]
    %v33 = vld [vmem:[%s2] sm:$0xff]
    %v34 = vld [vmem:[%s2 + $0x8] sm:$0xff]
    %v35 = vld [vmem:[%s2 + $0x10] sm:$0xf]
    %37 = vset.pattern.permute.xlu0 0
    %38 = vperm.xlu0 %37, %v33
    %v39 = vpop.permute.xlu0 %38
    %42 = vset.pattern.permute.xlu0 0
    %43 = vperm.xlu0 %42, %v34
    %v44 = vpop.permute.xlu0 %43
    %47 = vset.pattern.permute.xlu0 0
    %48 = vperm.xlu0 %47, %v35
    %v49 = vpop.permute.xlu0 %48
    %vm51 = vcmask 31744
    %v53 = vsel %vm51, %v30, 0
    %v56 = vsel %vm51, %v31, 0
    %v59 = vsel %vm51, %v32, 0
    %vm61 = vcmask 1043456
    %v63 = vsel %vm61, %v29, 0
    %65 = vmatprep.subr.mxu0 0.0
    %66 = vmatpush1.msra.mxu0 0.0
    %67 = vmatprep.subr.mxu0 0.0
    %68 = vmatpush1.msra.mxu0 0.0
    %69 = vmatprep.subr.mxu0 0.0
    %70 = vmatpush1.msra.mxu0 0.0
    %71 = vmatprep.subr.mxu0 0.0
    %72 = vmatpush1.msra.mxu0 0.0
    %73 = vmatprep.subr.mxu0 0.0
    %74 = vmatpush1.msra.mxu0 0.0
    %75 = vmatprep.subr.mxu0 0.0
    %76 = vmatpush1.msra.mxu0 0.0
    %77 = vmatprep.subr.mxu0 0.0
    %78 = vmatpush1.msra.mxu0 0.0
    %79 = vmatprep.subr.mxu0 0.0
    %80 = vmatpush1.msra.mxu0 0.0
    %81 = vmatprep.subr.mxu0 0.0
    %82 = vmatpush1.msra.mxu0 0.0
    %83 = vmatprep.subr.mxu0 0.0
    %84 = vmatpush1.msra.mxu0 0.0
    %85 = vmatprep.subr.mxu0 0.0
    %86 = vmatpush1.msra.mxu0 0.0
    %87 = vmatprep.subr.mxu0 0.0
    %88 = vmatpush1.msra.mxu0 0.0
    %89 = vmatprep.subr.mxu0 0.0
    %90 = vmatpush1.msra.mxu0 0.0
    %91 = vmatprep.subr.mxu0 0.0
    %92 = vmatpush1.msra.mxu0 0.0
    %93 = vmatprep.subr.mxu0 0.0
    %94 = vmatpush1.msra.mxu0 0.0
    %95 = vmatprep.subr.mxu0 0.0
    %96 = vmatpush1.msra.mxu0 %v63
    %97 = vmatprep.subr.mxu0 0.0
    %98 = vmatpush2.msra.mxu0 0.0
    %99 = vmatprep.subr.mxu0 0.0
    %100 = vmatpush2.msra.mxu0 0.0
    %101 = vmatprep.subr.mxu0 0.0
    %102 = vmatpush2.msra.mxu0 0.0
    %103 = vmatprep.subr.mxu0 0.0
    %104 = vmatpush2.msra.mxu0 0.0
    %105 = vmatprep.subr.mxu0 0.0
    %106 = vmatpush2.msra.mxu0 0.0
    %107 = vmatprep.subr.mxu0 0.0
    %108 = vmatpush2.msra.mxu0 0.0
    %109 = vmatprep.subr.mxu0 0.0
    %110 = vmatpush2.msra.mxu0 0.0
    %111 = vmatprep.subr.mxu0 0.0
    %112 = vmatpush2.msra.mxu0 0.0
    %113 = vmatprep.subr.mxu0 0.0
    %114 = vmatpush2.msra.mxu0 0.0
    %115 = vmatprep.subr.mxu0 0.0
    %116 = vmatpush2.msra.mxu0 0.0
    %117 = vmatprep.subr.mxu0 0.0
    %118 = vmatpush2.msra.mxu0 0.0
    %119 = vmatprep.subr.mxu0 0.0
    %120 = vmatpush2.msra.mxu0 0.0
    %121 = vmatprep.subr.mxu0 0.0
    %122 = vmatpush2.msra.mxu0 0.0
    %123 = vmatprep.subr.mxu0 0.0
    %124 = vmatpush2.msra.mxu0 0.0
    %125 = vmatprep.subr.mxu0 0.0
    %126 = vmatpush2.msra.mxu0 0.0
    %127 = vmatprep.subr.mxu0 0.0
    %128 = vmatpush2.msra.mxu0 0.0
    %129 = vmatprep.mubr.f32.mxu0 0.0
    %130 = vmatmul.mubr.f32.gmra.mxu0 %v53
    %v131 = vpop.f32.mrf.mxu0
    %v132 = vadd.f32 %v39, %v131
    %v133 = vpop.f32.mrf.mxu0
    %134 = vmatprep.mubr.f32.mxu0 0.0
    %135 = vmatmul.mubr.f32.gmra.mxu0 %v56
    %v136 = vpop.f32.mrf.mxu0
    %v137 = vadd.f32 %v44, %v136
    %v138 = vpop.f32.mrf.mxu0
    %139 = vmatprep.mubr.f32.mxu0 0.0
    %140 = vmatmul.mubr.f32.gmra.mxu0 %v59
    %v141 = vpop.f32.mrf.mxu0
    %v142 = vadd.f32 %v49, %v141
    %v143 = vpop.f32.mrf.mxu0
    %144 = vdwg.mxu0
    %v145 = vmax.f32 %v132, 0.0
    %v146 = vmax.f32 %v137, 0.0
    %v147 = vmax.f32 %v142, 0.0
    %v148 = vld [vmem:[%s3] sm:$0xff]
    %v149 = vld [vmem:[%s3 + $0x8] sm:$0xff]
    %v150 = vld [vmem:[%s3 + $0x10] sm:$0xf]
    %v151 = vld [vmem:[%s4] sm:$0xff]
    %v152 = vld [vmem:[%s4 + $0x8] sm:$0xff]
    %v153 = vld [vmem:[%s4 + $0x10] sm:$0xf]
    %155 = vset.pattern.permute.xlu0 0
    %156 = vperm.xlu0 %155, %v151
    %v157 = vpop.permute.xlu0 %156
    %160 = vset.pattern.permute.xlu0 0
    %161 = vperm.xlu0 %160, %v152
    %v162 = vpop.permute.xlu0 %161
    %165 = vset.pattern.permute.xlu0 0
    %166 = vperm.xlu0 %165, %v153
    %v167 = vpop.permute.xlu0 %166
    %vm169 = vcmask 162816
    %v171 = vsel %vm169, %v148, 0
    %v174 = vsel %vm169, %v149, 0
    %v177 = vsel %vm169, %v150, 0
    %v180 = vsel %vm61, %v147, 0
    %182 = vmatprep.subr.mxu0 0.0
    %183 = vmatpush1.msra.mxu0 0.0
    %184 = vmatprep.subr.mxu0 0.0
    %185 = vmatpush1.msra.mxu0 0.0
    %186 = vmatprep.subr.mxu0 0.0
    %187 = vmatpush1.msra.mxu0 0.0
    %188 = vmatprep.subr.mxu0 0.0
    %189 = vmatpush1.msra.mxu0 0.0
    %190 = vmatprep.subr.mxu0 0.0
    %191 = vmatpush1.msra.mxu0 0.0
    %192 = vmatprep.subr.mxu0 0.0
    %193 = vmatpush1.msra.mxu0 0.0
    %194 = vmatprep.subr.mxu0 0.0
    %195 = vmatpush1.msra.mxu0 0.0
    %196 = vmatprep.subr.mxu0 0.0
    %197 = vmatpush1.msra.mxu0 0.0
    %198 = vmatprep.subr.mxu0 0.0
    %199 = vmatpush1.msra.mxu0 0.0
    %200 = vmatprep.subr.mxu0 0.0
    %201 = vmatpush1.msra.mxu0 0.0
    %202 = vmatprep.subr.mxu0 0.0
    %203 = vmatpush1.msra.mxu0 0.0
    %204 = vmatprep.subr.mxu0 0.0
    %205 = vmatpush1.msra.mxu0 0.0
    %206 = vmatprep.subr.mxu0 0.0
    %207 = vmatpush1.msra.mxu0 0.0
    %208 = vmatprep.subr.mxu0 0.0
    %209 = vmatpush1.msra.mxu0 %v180
    %210 = vmatprep.subr.mxu0 0.0
    %211 = vmatpush1.msra.mxu0 %v146
    %212 = vmatprep.subr.mxu0 0.0
    %213 = vmatpush1.msra.mxu0 %v145
    %214 = vmatprep.subr.mxu0 0.0
    %215 = vmatpush2.msra.mxu0 0.0
    %216 = vmatprep.subr.mxu0 0.0
    %217 = vmatpush2.msra.mxu0 0.0
    %218 = vmatprep.subr.mxu0 0.0
    %219 = vmatpush2.msra.mxu0 0.0
    %220 = vmatprep.subr.mxu0 0.0
    %221 = vmatpush2.msra.mxu0 0.0
    %222 = vmatprep.subr.mxu0 0.0
    %223 = vmatpush2.msra.mxu0 0.0
    %224 = vmatprep.subr.mxu0 0.0
    %225 = vmatpush2.msra.mxu0 0.0
    %226 = vmatprep.subr.mxu0 0.0
    %227 = vmatpush2.msra.mxu0 0.0
    %228 = vmatprep.subr.mxu0 0.0
    %229 = vmatpush2.msra.mxu0 0.0
    %230 = vmatprep.subr.mxu0 0.0
    %231 = vmatpush2.msra.mxu0 0.0
    %232 = vmatprep.subr.mxu0 0.0
    %233 = vmatpush2.msra.mxu0 0.0
    %234 = vmatprep.subr.mxu0 0.0
    %235 = vmatpush2.msra.mxu0 0.0
    %236 = vmatprep.subr.mxu0 0.0
    %237 = vmatpush2.msra.mxu0 0.0
    %238 = vmatprep.subr.mxu0 0.0
    %239 = vmatpush2.msra.mxu0 0.0
    %240 = vmatprep.subr.mxu0 0.0
    %241 = vmatpush2.msra.mxu0 0.0
    %242 = vmatprep.subr.mxu0 0.0
    %243 = vmatpush2.msra.mxu0 0.0
    %244 = vmatprep.subr.mxu0 0.0
    %245 = vmatpush2.msra.mxu0 0.0
    %246 = vmatprep.mubr.f32.mxu0 0.0
    %247 = vmatmul.mubr.f32.gmra.mxu0 %v171
    %v248 = vpop.f32.mrf.mxu0
    %v249 = vadd.f32 %v157, %v248
    %v250 = vpop.f32.mrf.mxu0
    %251 = vmatprep.mubr.f32.mxu0 0.0
    %252 = vmatmul.mubr.f32.gmra.mxu0 %v174
    %v253 = vpop.f32.mrf.mxu0
    %v254 = vadd.f32 %v162, %v253
    %v255 = vpop.f32.mrf.mxu0
    %256 = vmatprep.mubr.f32.mxu0 0.0
    %257 = vmatmul.mubr.f32.gmra.mxu0 %v177
    %v258 = vpop.f32.mrf.mxu0
    %v259 = vadd.f32 %v167, %v258
    %v260 = vpop.f32.mrf.mxu0
    %261 = vdwg.mxu0
    %v262 = vmax.f32 %v249, 0.0
    %v263 = vmax.f32 %v254, 0.0
    %v264 = vmax.f32 %v259, 0.0
    %v265 = vld [vmem:[%s5] sm:$0x1]
    %v266 = vld [vmem:[#allocation2] sm:$0x1]
    %268 = vset.pattern.permute.xlu0 0
    %269 = vperm.xlu0 %268, %v266
    %v270 = vpop.permute.xlu0 %269
    %v272 = vlaneseq
    %v273 = vshrl.u32 %v272, 7
    %v274 = vsub.s32 0, %v273
    %v275 = vrot.slane %v270, %v274
    %v277 = vsel %vm169, %v265, 0
    %v280 = vsel %vm61, %v264, 0
    %282 = vmatprep.subr.mxu0 0.0
    %283 = vmatpush1.msra.mxu0 0.0
    %284 = vmatprep.subr.mxu0 0.0
    %285 = vmatpush1.msra.mxu0 0.0
    %286 = vmatprep.subr.mxu0 0.0
    %287 = vmatpush1.msra.mxu0 0.0
    %288 = vmatprep.subr.mxu0 0.0
    %289 = vmatpush1.msra.mxu0 0.0
    %290 = vmatprep.subr.mxu0 0.0
    %291 = vmatpush1.msra.mxu0 0.0
    %292 = vmatprep.subr.mxu0 0.0
    %293 = vmatpush1.msra.mxu0 0.0
    %294 = vmatprep.subr.mxu0 0.0
    %295 = vmatpush1.msra.mxu0 0.0
    %296 = vmatprep.subr.mxu0 0.0
    %297 = vmatpush1.msra.mxu0 0.0
    %298 = vmatprep.subr.mxu0 0.0
    %299 = vmatpush1.msra.mxu0 0.0
    %300 = vmatprep.subr.mxu0 0.0
    %301 = vmatpush1.msra.mxu0 0.0
    %302 = vmatprep.subr.mxu0 0.0
    %303 = vmatpush1.msra.mxu0 0.0
    %304 = vmatprep.subr.mxu0 0.0
    %305 = vmatpush1.msra.mxu0 0.0
    %306 = vmatprep.subr.mxu0 0.0
    %307 = vmatpush1.msra.mxu0 0.0
    %308 = vmatprep.subr.mxu0 0.0
    %309 = vmatpush1.msra.mxu0 %v280
    %310 = vmatprep.subr.mxu0 0.0
    %311 = vmatpush1.msra.mxu0 %v263
    %312 = vmatprep.subr.mxu0 0.0
    %313 = vmatpush1.msra.mxu0 %v262
    %314 = vmatprep.subr.mxu0 0.0
    %315 = vmatpush2.msra.mxu0 0.0
    %316 = vmatprep.subr.mxu0 0.0
    %317 = vmatpush2.msra.mxu0 0.0
    %318 = vmatprep.subr.mxu0 0.0
    %319 = vmatpush2.msra.mxu0 0.0
    %320 = vmatprep.subr.mxu0 0.0
    %321 = vmatpush2.msra.mxu0 0.0
    %322 = vmatprep.subr.mxu0 0.0
    %323 = vmatpush2.msra.mxu0 0.0
    %324 = vmatprep.subr.mxu0 0.0
    %325 = vmatpush2.msra.mxu0 0.0
    %326 = vmatprep.subr.mxu0 0.0
    %327 = vmatpush2.msra.mxu0 0.0
    %328 = vmatprep.subr.mxu0 0.0
    %329 = vmatpush2.msra.mxu0 0.0
    %330 = vmatprep.subr.mxu0 0.0
    %331 = vmatpush2.msra.mxu0 0.0
    %332 = vmatprep.subr.mxu0 0.0
    %333 = vmatpush2.msra.mxu0 0.0
    %334 = vmatprep.subr.mxu0 0.0
    %335 = vmatpush2.msra.mxu0 0.0
    %336 = vmatprep.subr.mxu0 0.0
    %337 = vmatpush2.msra.mxu0 0.0
    %338 = vmatprep.subr.mxu0 0.0
    %339 = vmatpush2.msra.mxu0 0.0
    %340 = vmatprep.subr.mxu0 0.0
    %341 = vmatpush2.msra.mxu0 0.0
    %342 = vmatprep.subr.mxu0 0.0
    %343 = vmatpush2.msra.mxu0 0.0
    %344 = vmatprep.subr.mxu0 0.0
    %345 = vmatpush2.msra.mxu0 0.0
    %346 = vmatprep.mubr.f32.mxu0 0.0
    %347 = vmatmul.mubr.f32.gmra.mxu0 %v277
    %v348 = vpop.f32.mrf.mxu0
    %v349 = vadd.f32 %v275, %v348
    %v350 = vpop.f32.mrf.mxu0
    %351 = vdwg.mxu0
    %352 = vst [vmem:[#allocation3] sm:$0x1] %v349
    // Predicated region
    $region30: #{tpu_custom_call.1} parent=1 // pred_check
      _
    $region31: #{tpu_custom_call.1} parent=1 // pred_check_branch
      %354 = sbr.rel (0) target = $region33
    $region32: #{tpu_custom_call.1} parent=1 // pred_region
      %s356 = ssub.s32 16, 16
      %357 = vsyncadd [#allocation4], %s356
      %s359 = sshll.u32 [#allocation3], 4
      %s360 = int_to_ptr.vmem [resolvable:$true] %s359
      %362 = dma.vmem_to_hbm [thread:$0]  %s360, 16, %s7, [#allocation4]
    $region33: #{tpu_custom_call.1} parent=1 // pred_fallthru
      _
    // Predicated region
    $region34: #{tpu_custom_call.1} parent=1 // pred_check
      _
    $region35: #{tpu_custom_call.1} parent=1 // pred_check_branch
      %364 = sbr.rel (0) target = $region37
    $region36: #{tpu_custom_call.1} parent=1 // pred_region
      %365 = dma.done [#allocation4], 16
    $region37: #{tpu_custom_call.1} parent=1 // pred_fallthru
      _
    %366 = vsyncpa [#allocation4], 1

</llo_original>
